<compile_context>
chip_gen: v6e
topology: v6e:2x2x1
jax: 0.10.0
libtpu: 0.0.40
codegen_flags: <defaults>
</compile_context>

<pallas_src>
import jax
import jax.numpy as jnp
from jax.experimental import pallas as pl
from jax.experimental.pallas import tpu as pltpu


def _sentiment_kernel(x_ref, h_ref, w1x_ref, w1h_ref, b1_ref, w2_ref, b2_ref, o_ref):
    # Cast activation tiles to the weight (compute) dtype in-kernel; this is a
    # no-op when the caller already supplies matching-dtype activations.
    cdt = w1x_ref.dtype
    x = x_ref[...].astype(cdt)
    h = h_ref[...].astype(cdt)

    # layer1: Linear(embed+hidden -> hidden) as two accumulated matmuls
    # (no concat, no transpose), f32 accumulation, then ReLU.
    out1 = (
        jnp.dot(x, w1x_ref[...], preferred_element_type=jnp.float32)
        + jnp.dot(h, w1h_ref[...], preferred_element_type=jnp.float32)
        + b1_ref[...]
    )
    out1 = jnp.maximum(out1, 0.0).astype(w2_ref.dtype)

    # layer2: Linear(hidden -> polarity_num), stored unpadded (masked store).
    logits = jnp.dot(out1, w2_ref[...], preferred_element_type=jnp.float32) + b2_ref[...]
    o_ref[...] = logits.astype(o_ref.dtype)


def _round_up(x, m):
    return ((x + m - 1) // m) * m


def shared_sentiment_prediction_v2(v_X, v_H, W1, b1, W2, b2, *,
                                   block_batch=2048,
                                   compute_dtype=jnp.bfloat16):
    """Forward pass of Shared_Sentiment_Prediction_v2.

    v_X: (batch, embed_dim)
    v_H: (batch, hidden_dim)
    W1:  (hidden_dim, embed_dim + hidden_dim)   [nn.Linear layout]
    b1:  (hidden_dim,) or (1, hidden_dim)
    W2:  (polarity_num, hidden_dim)             [nn.Linear layout]
    b2:  (polarity_num,) or (1, polarity_num)
    returns logits: (batch, polarity_num) float32
    """
    v_X = jnp.asarray(v_X)
    v_H = jnp.asarray(v_H)
    batch, embed_dim = v_X.shape
    hidden_dim = v_H.shape[1]
    polarity_num = W2.shape[0]
    out_dt = jnp.float32
    cdt = jnp.dtype(compute_dtype)

    # ---- one-time wrapper-side layout prep (weights only; no activation copies) ----
    # Split + transpose layer1 weight so both dots contract on the last axis.
    W1x = jnp.asarray(W1)[:, :embed_dim].astype(cdt).T       # (embed_dim, hidden_dim)
    W1h = jnp.asarray(W1)[:, embed_dim:].astype(cdt).T       # (hidden_dim, hidden_dim)
    W2t = jnp.asarray(W2).astype(cdt).T                      # (hidden_dim, polarity_num)
    b1r = jnp.asarray(b1, out_dt).reshape(1, hidden_dim)
    b2r = jnp.asarray(b2, out_dt).reshape(1, polarity_num)

    # ---- batch tiling: no padding; ragged last tile is masked by Pallas ----
    TB = min(block_batch, _round_up(batch, 8))
    # Prefer >= 2 grid steps so the "parallel" batch axis can shard across the
    # two TensorCores on v7x (no effect on v5e/v6e, which have one TC).
    if pl.cdiv(batch, TB) < 2 and batch >= 16:
        TB = _round_up(pl.cdiv(batch, 2), 8)
    grid = (pl.cdiv(batch, TB),)

    # ---- VMEM budget: double-buffered activation/output tiles + resident weights ----
    a_itm = v_X.dtype.itemsize
    h_itm = v_H.dtype.itemsize
    w_itm = cdt.itemsize
    vmem_est = (
        2 * TB * embed_dim * a_itm
        + 2 * TB * hidden_dim * h_itm
        + 2 * TB * polarity_num * 4
        + 2 * (embed_dim + hidden_dim) * hidden_dim * w_itm
        + 2 * hidden_dim * polarity_num * w_itm
        + 2 * (hidden_dim + polarity_num) * 4
    )
    vmem_limit = int(min(48 * 1024 * 1024, max(32 * 1024 * 1024, 2 * vmem_est)))

    return pl.pallas_call(
        _sentiment_kernel,
        out_shape=jax.ShapeDtypeStruct((batch, polarity_num), out_dt),
        grid_spec=pltpu.PrefetchScalarGridSpec(
            num_scalar_prefetch=0,
            grid=grid,
            in_specs=[
                # activations: tiled over batch, double-buffered by the pipeliner
                pl.BlockSpec((TB, embed_dim), lambda i: (i, 0)),
                pl.BlockSpec((TB, hidden_dim), lambda i: (i, 0)),
                # weights / biases: constant index_map -> VMEM-resident across tiles
                pl.BlockSpec((embed_dim, hidden_dim), lambda i: (0, 0)),
                pl.BlockSpec((hidden_dim, hidden_dim), lambda i: (0, 0)),
                pl.BlockSpec((1, hidden_dim), lambda i: (0, 0)),
                pl.BlockSpec((hidden_dim, polarity_num), lambda i: (0, 0)),
                pl.BlockSpec((1, polarity_num), lambda i: (0, 0)),
            ],
            out_specs=pl.BlockSpec((TB, polarity_num), lambda i: (i, 0)),
        ),
        compiler_params=pltpu.CompilerParams(
            dimension_semantics=("parallel",),
            vmem_limit_bytes=vmem_limit,
        ),
    )(v_X, v_H, W1x, W1h, b1r, W2t, b2r)


def _reference(v_X, v_H, W1, b1, W2, b2):
    V = jnp.concatenate([v_X, v_H], axis=-1)
    out1 = jnp.maximum(V @ W1.T + b1.reshape(1, -1), 0.0)
    return out1 @ W2.T + b2.reshape(1, -1)


if __name__ == "__main__":
    batch = 8
    embed_dim = 32
    hidden_dim = 32
    polarity_num = 3

    key = jax.random.PRNGKey(0)
    k_x, k_h, k_w1, k_b1, k_w2, k_b2 = jax.random.split(key, 6)

    v_X = jax.random.normal(k_x, (batch, embed_dim), dtype=jnp.float32)
    v_H = jax.random.normal(k_h, (batch, hidden_dim), dtype=jnp.float32)

    # Deterministic parameter init (uniform, roughly matching nn.Linear scale).
    in1 = embed_dim + hidden_dim
    lim1 = 1.0 / float(in1) ** 0.5
    lim2 = 1.0 / float(hidden_dim) ** 0.5
    W1 = jax.random.uniform(k_w1, (hidden_dim, in1), jnp.float32, -lim1, lim1)
    b1 = jax.random.uniform(k_b1, (hidden_dim,), jnp.float32, -lim1, lim1)
    W2 = jax.random.uniform(k_w2, (polarity_num, hidden_dim), jnp.float32, -lim2, lim2)
    b2 = jax.random.uniform(k_b2, (polarity_num,), jnp.float32, -lim2, lim2)

    ref = _reference(v_X, v_H, W1, b1, W2, b2)

    # 1) f32 compute path: bitwise-comparable structure, tight tolerance.
    logits_f32 = shared_sentiment_prediction_v2(
        v_X, v_H, W1, b1, W2, b2, compute_dtype=jnp.float32)
    jax.block_until_ready(logits_f32)
    assert logits_f32.shape == (batch, polarity_num)
    assert jnp.allclose(logits_f32, ref, atol=1e-5, rtol=1e-5), (
        float(jnp.max(jnp.abs(logits_f32 - ref))))

    # 2) Default path (bf16 matmul operands, f32 accumulation): looser tolerance.
    logits_bf16 = shared_sentiment_prediction_v2(v_X, v_H, W1, b1, W2, b2)
    jax.block_until_ready(logits_bf16)
    assert logits_bf16.shape == (batch, polarity_num)
    assert jnp.allclose(logits_bf16, ref, atol=5e-2, rtol=5e-2), (
        float(jnp.max(jnp.abs(logits_bf16 - ref))))

    # 3) bf16 activations supplied by the caller (halved activation DMA path).
    logits_bf16_act = shared_sentiment_prediction_v2(
        v_X.astype(jnp.bfloat16), v_H.astype(jnp.bfloat16), W1, b1, W2, b2)
    jax.block_until_ready(logits_bf16_act)
    assert logits_bf16_act.shape == (batch, polarity_num)
    assert jnp.allclose(logits_bf16_act, ref, atol=5e-2, rtol=5e-2), (
        float(jnp.max(jnp.abs(logits_bf16_act - ref))))

    print("KERNEL_OK")
</pallas_src>

<mosaic_0001>
module attributes {stable_mosaic.version = 11 : i64} {
  func.func @_sentiment_kernel(%arg0: i32, %arg1: memref<8x32xf32, #tpu.memory_space<vmem>>, %arg2: memref<8x32xf32, #tpu.memory_space<vmem>>, %arg3: memref<32x32xf32, #tpu.memory_space<vmem>>, %arg4: memref<32x32xf32, #tpu.memory_space<vmem>>, %arg5: memref<1x32xf32, #tpu.memory_space<vmem>>, %arg6: memref<32x3xf32, #tpu.memory_space<vmem>>, %arg7: memref<1x3xf32, #tpu.memory_space<vmem>>, %arg8: memref<8x3xf32, #tpu.memory_space<vmem>>) attributes {dimension_semantics = [#tpu.dimension_semantics<parallel>], iteration_bounds = array<i64: 1>, scalar_prefetch = 0 : i64, scratch_operands = 0 : i64, tpu.core_type = #tpu.core_type<tc>, window_params = [{transform_indices = @transform_0, window_bounds = array<i64: 8, 32>}, {transform_indices = @transform_1, window_bounds = array<i64: 8, 32>}, {pipeline_mode = #tpu.pipeline_mode<synchronous>, transform_indices = @transform_2, window_bounds = array<i64: 32, 32>}, {pipeline_mode = #tpu.pipeline_mode<synchronous>, transform_indices = @transform_3, window_bounds = array<i64: 32, 32>}, {pipeline_mode = #tpu.pipeline_mode<synchronous>, transform_indices = @transform_4, window_bounds = array<i64: 1, 32>}, {pipeline_mode = #tpu.pipeline_mode<synchronous>, transform_indices = @transform_5, window_bounds = array<i64: 32, 3>}, {pipeline_mode = #tpu.pipeline_mode<synchronous>, transform_indices = @transform_6, window_bounds = array<i64: 1, 3>}, {transform_indices = @transform_7, window_bounds = array<i64: 8, 3>}]} {
    %c0 = arith.constant 0 : index
    %c0_0 = arith.constant 0 : index
    %0 = vector.load %arg1[%c0, %c0_0] : memref<8x32xf32, #tpu.memory_space<vmem>>, vector<8x32xf32>
    %c0_1 = arith.constant 0 : index
    %c0_2 = arith.constant 0 : index
    %1 = vector.load %arg2[%c0_1, %c0_2] : memref<8x32xf32, #tpu.memory_space<vmem>>, vector<8x32xf32>
    %c0_3 = arith.constant 0 : index
    %c0_4 = arith.constant 0 : index
    %2 = vector.load %arg3[%c0_3, %c0_4] : memref<32x32xf32, #tpu.memory_space<vmem>>, vector<32x32xf32>
    %cst = arith.constant dense<0.000000e+00> : vector<8x32xf32>
    %3 = tpu.matmul %0, %2, %cst {dimension_numbers = #tpu.dot_dimension_numbers<[1], [0], [0], [1], [0, 0, 1, 1], [], []>} : vector<8x32xf32>, vector<32x32xf32>, vector<8x32xf32> -> vector<8x32xf32>
    %c0_5 = arith.constant 0 : index
    %c0_6 = arith.constant 0 : index
    %4 = vector.load %arg4[%c0_5, %c0_6] : memref<32x32xf32, #tpu.memory_space<vmem>>, vector<32x32xf32>
    %cst_7 = arith.constant dense<0.000000e+00> : vector<8x32xf32>
    %5 = tpu.matmul %1, %4, %cst_7 {dimension_numbers = #tpu.dot_dimension_numbers<[1], [0], [0], [1], [0, 0, 1, 1], [], []>} : vector<8x32xf32>, vector<32x32xf32>, vector<8x32xf32> -> vector<8x32xf32>
    %6 = arith.addf %3, %5 : vector<8x32xf32>
    %c0_8 = arith.constant 0 : index
    %c0_9 = arith.constant 0 : index
    %7 = vector.load %arg5[%c0_8, %c0_9] : memref<1x32xf32, #tpu.memory_space<vmem>>, vector<1x32xf32>
    %8 = vector.broadcast %7 : vector<1x32xf32> to vector<8x32xf32>
    %9 = arith.addf %6, %8 : vector<8x32xf32>
    %cst_10 = arith.constant 0.000000e+00 : f32
    %10 = vector.broadcast %cst_10 : f32 to vector<8x32xf32>
    %11 = arith.maximumf %9, %10 : vector<8x32xf32>
    %c0_11 = arith.constant 0 : index
    %c0_12 = arith.constant 0 : index
    %12 = vector.load %arg6[%c0_11, %c0_12] : memref<32x3xf32, #tpu.memory_space<vmem>>, vector<32x3xf32>
    %cst_13 = arith.constant dense<0.000000e+00> : vector<8x3xf32>
    %13 = tpu.matmul %11, %12, %cst_13 {dimension_numbers = #tpu.dot_dimension_numbers<[1], [0], [0], [1], [0, 0, 1, 1], [], []>} : vector<8x32xf32>, vector<32x3xf32>, vector<8x3xf32> -> vector<8x3xf32>
    %c0_14 = arith.constant 0 : index
    %c0_15 = arith.constant 0 : index
    %14 = vector.load %arg7[%c0_14, %c0_15] : memref<1x3xf32, #tpu.memory_space<vmem>>, vector<1x3xf32>
    %15 = vector.broadcast %14 : vector<1x3xf32> to vector<8x3xf32>
    %16 = arith.addf %13, %15 : vector<8x3xf32>
    %c0_16 = arith.constant 0 : index
    %c0_17 = arith.constant 0 : index
    %17 = vector.load %arg8[%c0_16, %c0_17] : memref<8x3xf32, #tpu.memory_space<vmem>>, vector<8x3xf32>
    tpu.vector_store %arg8[%c0_16, %c0_17], %16 {strides = array<i32>} : memref<8x3xf32, #tpu.memory_space<vmem>>, vector<8x3xf32>,
    return
  }
  func.func @transform_0(%arg0: i32) -> (i32, i32) {
    %c0_i32 = arith.constant 0 : i32
    %c0_i32_0 = arith.constant 0 : i32
    return %arg0, %c0_i32 : i32, i32
  }
  func.func @transform_1(%arg0: i32) -> (i32, i32) {
    %c0_i32 = arith.constant 0 : i32
    %c0_i32_0 = arith.constant 0 : i32
    return %arg0, %c0_i32 : i32, i32
  }
  func.func @transform_2(%arg0: i32) -> (i32, i32) {
    %c0_i32 = arith.constant 0 : i32
    %c0_i32_0 = arith.constant 0 : i32
    %c0_i32_1 = arith.constant 0 : i32
    return %c0_i32, %c0_i32_0 : i32, i32
  }
  func.func @transform_3(%arg0: i32) -> (i32, i32) {
    %c0_i32 = arith.constant 0 : i32
    %c0_i32_0 = arith.constant 0 : i32
    %c0_i32_1 = arith.constant 0 : i32
    return %c0_i32, %c0_i32_0 : i32, i32
  }
  func.func @transform_4(%arg0: i32) -> (i32, i32) {
    %c0_i32 = arith.constant 0 : i32
    %c0_i32_0 = arith.constant 0 : i32
    %c0_i32_1 = arith.constant 0 : i32
    return %c0_i32, %c0_i32_0 : i32, i32
  }
  func.func @transform_5(%arg0: i32) -> (i32, i32) {
    %c0_i32 = arith.constant 0 : i32
    %c0_i32_0 = arith.constant 0 : i32
    %c0_i32_1 = arith.constant 0 : i32
    return %c0_i32, %c0_i32_0 : i32, i32
  }
  func.func @transform_6(%arg0: i32) -> (i32, i32) {
    %c0_i32 = arith.constant 0 : i32
    %c0_i32_0 = arith.constant 0 : i32
    %c0_i32_1 = arith.constant 0 : i32
    return %c0_i32, %c0_i32_0 : i32, i32
  }
  func.func @transform_7(%arg0: i32) -> (i32, i32) {
    %c0_i32 = arith.constant 0 : i32
    %c0_i32_0 = arith.constant 0 : i32
    return %arg0, %c0_i32 : i32, i32
  }
}

</mosaic_0001>

<llo_original>
// kernel: tpu_custom_call.1
$region0: #{tpu_custom_call.1}
  #allocation0 [shape = 'u32[]', space=smem, size = 0x4, offset = 0x4, fixed_abs, tag = 'smem constant byte address 0x4 - core index']
  #allocation1 [shape = 'u32[144,128]{1,0:T(1,128)}', space=vmem, size = 0x12000, scoped, tag = 'internal scratch']
  %s0 = inlined_call_operand.hbm [shape: f32[8,32], index: 0, kind: input, shape index: {}]
  %s1 = inlined_call_operand.hbm [shape: f32[8,32], index: 1, kind: input, shape index: {}]
  %s2 = inlined_call_operand.vmem [shape: f32[32,32], index: 2, kind: input, shape index: {}]
  %s3 = inlined_call_operand.hbm [shape: f32[32,32], index: 3, kind: input, shape index: {}]
  %s4 = inlined_call_operand.vmem [shape: f32[1,32], index: 4, kind: input, shape index: {}]
  %s5 = inlined_call_operand.vmem [shape: f32[32,3], index: 5, kind: input, shape index: {}]
  %s6 = inlined_call_operand.vmem [shape: f32[1,3], index: 6, kind: input, shape index: {}]
  %s7 = inlined_call_operand.vmem [shape: f32[8,3], index: 7, kind: output, shape index: {}]
  %s8 = sld [smem:[#allocation0]]
  $region50: #{tpu_custom_call.1} parent=0
    _
  %s10 = ssub.s32 1, %s8
  %s11 = scalar_select 0, %s10, %s8
  $region1: #{tpu_custom_call.1} parent=0
    #allocation2 [shape = 'u8[4096]{0}', space=vmem, size = 0x1000, scoped, tag = 'input window, operand 0, single buffered']
    #allocation3 [shape = 's32[1]{0}', space=sflag, size = 0x4, scoped, tag = 'scoped memory for tpu_custom_call.1']
    #allocation4 [shape = 'u8[4096]{0}', space=vmem, size = 0x1000, scoped, tag = 'input window, operand 1, single buffered']
    #allocation5 [shape = 's32[1]{0}', space=sflag, size = 0x4, scoped, tag = 'scoped memory for tpu_custom_call.1']
    #allocation6 [shape = 'u8[16384]{0}', space=vmem, size = 0x4000, scoped, tag = 'input window, operand 3, single buffered']
    %12 = vsyncpa [#allocation3], 0
    %13 = vsyncpa [#allocation5], 0
    // Predicated region
    $region2: #{tpu_custom_call.1} parent=1 // pred_check
      _
    $region3: #{tpu_custom_call.1} parent=1 // pred_check_branch
      %15 = sbr.rel (0) target = $region5
    $region4: #{tpu_custom_call.1} parent=1 // pred_region
      %s17 = ssub.s32 128, 128
      %18 = vsyncadd [#allocation3], %s17
      %s20 = sshll.u32 [#allocation2], 4
      %s21 = int_to_ptr.vmem [resolvable:$true] %s20
      %23 = dma.hbm_to_vmem [thread:$0]  %s0, 128, %s21, [#allocation3]
    $region5: #{tpu_custom_call.1} parent=1 // pred_fallthru
      _
    // Predicated region
    $region6: #{tpu_custom_call.1} parent=1 // pred_check
      _
    $region7: #{tpu_custom_call.1} parent=1 // pred_check_branch
      %25 = sbr.rel (0) target = $region9
    $region8: #{tpu_custom_call.1} parent=1 // pred_region
      %s27 = ssub.s32 128, 128
      %28 = vsyncadd [#allocation5], %s27
      %s30 = sshll.u32 [#allocation4], 4
      %s31 = int_to_ptr.vmem [resolvable:$true] %s30
      %33 = dma.hbm_to_vmem [thread:$0]  %s1, 128, %s31, [#allocation5]
    $region9: #{tpu_custom_call.1} parent=1 // pred_fallthru
      _
    // Predicated region
    $region10: #{tpu_custom_call.1} parent=1 // pred_check
      _
    $region11: #{tpu_custom_call.1} parent=1 // pred_check_branch
      %35 = sbr.rel (0) target = $region13
    $region12: #{tpu_custom_call.1} parent=1 // pred_region
      _
    $region13: #{tpu_custom_call.1} parent=1 // pred_fallthru
      _
    // Predicated region
    $region14: #{tpu_custom_call.1} parent=1 // pred_check
      _
    $region15: #{tpu_custom_call.1} parent=1 // pred_check_branch
      %37 = sbr.rel (0) target = $region17
    $region16: #{tpu_custom_call.1} parent=1 // pred_region
      %s39 = ssub.s32 512, 512
      %40 = vsyncadd [#allocation5], %s39
      %s41 = sshll.u32 [#allocation6], 4
      %s42 = int_to_ptr.vmem [resolvable:$true] %s41
      %47 = dma.hbm_to_vmem [thread:$0]  %s3, 512, %s42, [#allocation5], 128, 128, 8
    $region17: #{tpu_custom_call.1} parent=1 // pred_fallthru
      _
    // Predicated region
    $region18: #{tpu_custom_call.1} parent=1 // pred_check
      _
    $region19: #{tpu_custom_call.1} parent=1 // pred_check_branch
      %49 = sbr.rel (0) target = $region21
    $region20: #{tpu_custom_call.1} parent=1 // pred_region
      _
    $region21: #{tpu_custom_call.1} parent=1 // pred_fallthru
      _
    // Predicated region
    $region22: #{tpu_custom_call.1} parent=1 // pred_check
      _
    $region23: #{tpu_custom_call.1} parent=1 // pred_check_branch
      %51 = sbr.rel (0) target = $region25
    $region24: #{tpu_custom_call.1} parent=1 // pred_region
      _
    $region25: #{tpu_custom_call.1} parent=1 // pred_fallthru
      _
    // Predicated region
    $region26: #{tpu_custom_call.1} parent=1 // pred_check
      _
    $region27: #{tpu_custom_call.1} parent=1 // pred_check_branch
      %53 = sbr.rel (0) target = $region29
    $region28: #{tpu_custom_call.1} parent=1 // pred_region
      _
    $region29: #{tpu_custom_call.1} parent=1 // pred_fallthru
      _
    // Predicated region
    $region30: #{tpu_custom_call.1} parent=1 // pred_check
      _
    $region31: #{tpu_custom_call.1} parent=1 // pred_check_branch
      %55 = sbr.rel (0) target = $region33
    $region32: #{tpu_custom_call.1} parent=1 // pred_region
      %56 = dma.done [#allocation3], 128
    $region33: #{tpu_custom_call.1} parent=1 // pred_fallthru
      _
    // Predicated region
    $region34: #{tpu_custom_call.1} parent=1 // pred_check
      _
    $region35: #{tpu_custom_call.1} parent=1 // pred_check_branch
      %58 = sbr.rel (0) target = $region37
    $region36: #{tpu_custom_call.1} parent=1 // pred_region
      %59 = dma.done [#allocation5], 128
    $region37: #{tpu_custom_call.1} parent=1 // pred_fallthru
      _
    // Predicated region
    $region38: #{tpu_custom_call.1} parent=1 // pred_check
      _
    $region39: #{tpu_custom_call.1} parent=1 // pred_check_branch
      %61 = sbr.rel (0) target = $region41
    $region40: #{tpu_custom_call.1} parent=1 // pred_region
      %62 = dma.done [#allocation5], 512
    $region41: #{tpu_custom_call.1} parent=1 // pred_fallthru
      _
    %v63 = vld [vmem:[#allocation2] sm:$0xff]
    %v64 = vld [vmem:[#allocation4] sm:$0xff]
    %v65 = vld [vmem:[%s2] sm:$0xff]
    %v66 = vld [vmem:[%s2 + $0x8] sm:$0xff]
    %v67 = vld [vmem:[%s2 + $0x10] sm:$0xff]
    %v68 = vld [vmem:[%s2 + $0x18] sm:$0xff]
    %v69 = vld [vmem:[#allocation6] sm:$0xff]
    %v70 = vld [vmem:[#allocation6 + $0x8] sm:$0xff]
    %v71 = vld [vmem:[#allocation6 + $0x10] sm:$0xff]
    %v72 = vld [vmem:[#allocation6 + $0x18] sm:$0xff]
    %vm73 = vcmask 261120
    %v75 = vsel %vm73, %v64, 0
    %77 = vmatprep.subr.mxu0 0.0
    %78 = vmatpush1.msra.mxu0 0.0
    %79 = vmatprep.subr.mxu0 0.0
    %80 = vmatpush1.msra.mxu0 0.0
    %81 = vmatprep.subr.mxu0 0.0
    %82 = vmatpush1.msra.mxu0 0.0
    %83 = vmatprep.subr.mxu0 0.0
    %84 = vmatpush1.msra.mxu0 0.0
    %85 = vmatprep.subr.mxu0 0.0
    %86 = vmatpush1.msra.mxu0 0.0
    %87 = vmatprep.subr.mxu0 0.0
    %88 = vmatpush1.msra.mxu0 0.0
    %89 = vmatprep.subr.mxu0 0.0
    %90 = vmatpush1.msra.mxu0 0.0
    %91 = vmatprep.subr.mxu0 0.0
    %92 = vmatpush1.msra.mxu0 0.0
    %93 = vmatprep.subr.mxu0 0.0
    %94 = vmatpush1.msra.mxu0 0.0
    %95 = vmatprep.subr.mxu0 0.0
    %96 = vmatpush1.msra.mxu0 0.0
    %97 = vmatprep.subr.mxu0 0.0
    %98 = vmatpush1.msra.mxu0 0.0
    %99 = vmatprep.subr.mxu0 0.0
    %100 = vmatpush1.msra.mxu0 0.0
    %101 = vmatprep.subr.mxu0 0.0
    %102 = vmatpush1.msra.mxu0 %v72
    %103 = vmatprep.subr.mxu0 0.0
    %104 = vmatpush1.msra.mxu0 %v71
    %105 = vmatprep.subr.mxu0 0.0
    %106 = vmatpush1.msra.mxu0 %v70
    %107 = vmatprep.subr.mxu0 0.0
    %108 = vmatpush1.msra.mxu0 %v69
    %109 = vmatprep.subr.mxu0 0.0
    %110 = vmatpush2.msra.mxu0 0.0
    %111 = vmatprep.subr.mxu0 0.0
    %112 = vmatpush2.msra.mxu0 0.0
    %113 = vmatprep.subr.mxu0 0.0
    %114 = vmatpush2.msra.mxu0 0.0
    %115 = vmatprep.subr.mxu0 0.0
    %116 = vmatpush2.msra.mxu0 0.0
    %117 = vmatprep.subr.mxu0 0.0
    %118 = vmatpush2.msra.mxu0 0.0
    %119 = vmatprep.subr.mxu0 0.0
    %120 = vmatpush2.msra.mxu0 0.0
    %121 = vmatprep.subr.mxu0 0.0
    %122 = vmatpush2.msra.mxu0 0.0
    %123 = vmatprep.subr.mxu0 0.0
    %124 = vmatpush2.msra.mxu0 0.0
    %125 = vmatprep.subr.mxu0 0.0
    %126 = vmatpush2.msra.mxu0 0.0
    %127 = vmatprep.subr.mxu0 0.0
    %128 = vmatpush2.msra.mxu0 0.0
    %129 = vmatprep.subr.mxu0 0.0
    %130 = vmatpush2.msra.mxu0 0.0
    %131 = vmatprep.subr.mxu0 0.0
    %132 = vmatpush2.msra.mxu0 0.0
    %133 = vmatprep.subr.mxu0 0.0
    %134 = vmatpush2.msra.mxu0 0.0
    %135 = vmatprep.subr.mxu0 0.0
    %136 = vmatpush2.msra.mxu0 0.0
    %137 = vmatprep.subr.mxu0 0.0
    %138 = vmatpush2.msra.mxu0 0.0
    %139 = vmatprep.subr.mxu0 0.0
    %140 = vmatpush2.msra.mxu0 0.0
    %141 = vmatprep.mubr.f32.mxu0 0.0
    %142 = vmatmul.mubr.f32.gmra.mxu0 %v75
    %v143 = vpop.f32.mrf.mxu0
    %v144 = vadd.f32 0.0, %v143
    %v145 = vpop.f32.mrf.mxu0
    %146 = vdwg.mxu0
    %v148 = vsel %vm73, %v63, 0
    %150 = vmatprep.subr.mxu0 0.0
    %151 = vmatpush1.msra.mxu0 0.0
    %152 = vmatprep.subr.mxu0 0.0
    %153 = vmatpush1.msra.mxu0 0.0
    %154 = vmatprep.subr.mxu0 0.0
    %155 = vmatpush1.msra.mxu0 0.0
    %156 = vmatprep.subr.mxu0 0.0
    %157 = vmatpush1.msra.mxu0 0.0
    %158 = vmatprep.subr.mxu0 0.0
    %159 = vmatpush1.msra.mxu0 0.0
    %160 = vmatprep.subr.mxu0 0.0
    %161 = vmatpush1.msra.mxu0 0.0
    %162 = vmatprep.subr.mxu0 0.0
    %163 = vmatpush1.msra.mxu0 0.0
    %164 = vmatprep.subr.mxu0 0.0
    %165 = vmatpush1.msra.mxu0 0.0
    %166 = vmatprep.subr.mxu0 0.0
    %167 = vmatpush1.msra.mxu0 0.0
    %168 = vmatprep.subr.mxu0 0.0
    %169 = vmatpush1.msra.mxu0 0.0
    %170 = vmatprep.subr.mxu0 0.0
    %171 = vmatpush1.msra.mxu0 0.0
    %172 = vmatprep.subr.mxu0 0.0
    %173 = vmatpush1.msra.mxu0 0.0
    %174 = vmatprep.subr.mxu0 0.0
    %175 = vmatpush1.msra.mxu0 %v68
    %176 = vmatprep.subr.mxu0 0.0
    %177 = vmatpush1.msra.mxu0 %v67
    %178 = vmatprep.subr.mxu0 0.0
    %179 = vmatpush1.msra.mxu0 %v66
    %180 = vmatprep.subr.mxu0 0.0
    %181 = vmatpush1.msra.mxu0 %v65
    %182 = vmatprep.subr.mxu0 0.0
    %183 = vmatpush2.msra.mxu0 0.0
    %184 = vmatprep.subr.mxu0 0.0
    %185 = vmatpush2.msra.mxu0 0.0
    %186 = vmatprep.subr.mxu0 0.0
    %187 = vmatpush2.msra.mxu0 0.0
    %188 = vmatprep.subr.mxu0 0.0
    %189 = vmatpush2.msra.mxu0 0.0
    %190 = vmatprep.subr.mxu0 0.0
    %191 = vmatpush2.msra.mxu0 0.0
    %192 = vmatprep.subr.mxu0 0.0
    %193 = vmatpush2.msra.mxu0 0.0
    %194 = vmatprep.subr.mxu0 0.0
    %195 = vmatpush2.msra.mxu0 0.0
    %196 = vmatprep.subr.mxu0 0.0
    %197 = vmatpush2.msra.mxu0 0.0
    %198 = vmatprep.subr.mxu0 0.0
    %199 = vmatpush2.msra.mxu0 0.0
    %200 = vmatprep.subr.mxu0 0.0
    %201 = vmatpush2.msra.mxu0 0.0
    %202 = vmatprep.subr.mxu0 0.0
    %203 = vmatpush2.msra.mxu0 0.0
    %204 = vmatprep.subr.mxu0 0.0
    %205 = vmatpush2.msra.mxu0 0.0
    %206 = vmatprep.subr.mxu0 0.0
    %207 = vmatpush2.msra.mxu0 0.0
    %208 = vmatprep.subr.mxu0 0.0
    %209 = vmatpush2.msra.mxu0 0.0
    %210 = vmatprep.subr.mxu0 0.0
    %211 = vmatpush2.msra.mxu0 0.0
    %212 = vmatprep.subr.mxu0 0.0
    %213 = vmatpush2.msra.mxu0 0.0
    %214 = vmatprep.mubr.f32.mxu0 0.0
    %215 = vmatmul.mubr.f32.gmra.mxu0 %v148
    %v216 = vpop.f32.mrf.mxu0
    %v217 = vadd.f32 %v144, %v216
    %v218 = vpop.f32.mrf.mxu0
    %219 = vdwg.mxu0
    %v220 = vld [vmem:[%s4] sm:$0x1]
    %v222 = vlaneseq
    %v223 = vshrl.u32 %v222, 7
    %v224 = vsub.s32 0, %v223
    %v225 = vrot.slane %v220, %v224
    %v227 = vadd.f32 %v217, %v225
    %v228 = vmax.f32 %v227, 0.0
    %v229 = vld [vmem:[%s5] sm:$0xff]
    %v230 = vld [vmem:[%s5 + $0x8] sm:$0xff]
    %v231 = vld [vmem:[%s5 + $0x10] sm:$0xff]
    %v232 = vld [vmem:[%s5 + $0x18] sm:$0xff]
    %v233 = vld [vmem:[%s6] sm:$0x1]
    %v235 = vlaneseq
    %v236 = vshrl.u32 %v235, 7
    %v237 = vsub.s32 0, %v236
    %v238 = vrot.slane %v233, %v237
    %v241 = vsel %vm73, %v228, 0
    %243 = vmatprep.subr.mxu0 0.0
    %244 = vmatpush1.msra.mxu0 0.0
    %245 = vmatprep.subr.mxu0 0.0
    %246 = vmatpush1.msra.mxu0 0.0
    %247 = vmatprep.subr.mxu0 0.0
    %248 = vmatpush1.msra.mxu0 0.0
    %249 = vmatprep.subr.mxu0 0.0
    %250 = vmatpush1.msra.mxu0 0.0
    %251 = vmatprep.subr.mxu0 0.0
    %252 = vmatpush1.msra.mxu0 0.0
    %253 = vmatprep.subr.mxu0 0.0
    %254 = vmatpush1.msra.mxu0 0.0
    %255 = vmatprep.subr.mxu0 0.0
    %256 = vmatpush1.msra.mxu0 0.0
    %257 = vmatprep.subr.mxu0 0.0
    %258 = vmatpush1.msra.mxu0 0.0
    %259 = vmatprep.subr.mxu0 0.0
    %260 = vmatpush1.msra.mxu0 0.0
    %261 = vmatprep.subr.mxu0 0.0
    %262 = vmatpush1.msra.mxu0 0.0
    %263 = vmatprep.subr.mxu0 0.0
    %264 = vmatpush1.msra.mxu0 0.0
    %265 = vmatprep.subr.mxu0 0.0
    %266 = vmatpush1.msra.mxu0 0.0
    %267 = vmatprep.subr.mxu0 0.0
    %268 = vmatpush1.msra.mxu0 %v232
    %269 = vmatprep.subr.mxu0 0.0
    %270 = vmatpush1.msra.mxu0 %v231
    %271 = vmatprep.subr.mxu0 0.0
    %272 = vmatpush1.msra.mxu0 %v230
    %273 = vmatprep.subr.mxu0 0.0
    %274 = vmatpush1.msra.mxu0 %v229
    %275 = vmatprep.subr.mxu0 0.0
    %276 = vmatpush2.msra.mxu0 0.0
    %277 = vmatprep.subr.mxu0 0.0
    %278 = vmatpush2.msra.mxu0 0.0
    %279 = vmatprep.subr.mxu0 0.0
    %280 = vmatpush2.msra.mxu0 0.0
    %281 = vmatprep.subr.mxu0 0.0
    %282 = vmatpush2.msra.mxu0 0.0
    %283 = vmatprep.subr.mxu0 0.0
    %284 = vmatpush2.msra.mxu0 0.0
    %285 = vmatprep.subr.mxu0 0.0
    %286 = vmatpush2.msra.mxu0 0.0
    %287 = vmatprep.subr.mxu0 0.0
    %288 = vmatpush2.msra.mxu0 0.0
    %289 = vmatprep.subr.mxu0 0.0
    %290 = vmatpush2.msra.mxu0 0.0
    %291 = vmatprep.subr.mxu0 0.0
    %292 = vmatpush2.msra.mxu0 0.0
    %293 = vmatprep.subr.mxu0 0.0
    %294 = vmatpush2.msra.mxu0 0.0
    %295 = vmatprep.subr.mxu0 0.0
    %296 = vmatpush2.msra.mxu0 0.0
    %297 = vmatprep.subr.mxu0 0.0
    %298 = vmatpush2.msra.mxu0 0.0
    %299 = vmatprep.subr.mxu0 0.0
    %300 = vmatpush2.msra.mxu0 0.0
    %301 = vmatprep.subr.mxu0 0.0
    %302 = vmatpush2.msra.mxu0 0.0
    %303 = vmatprep.subr.mxu0 0.0
    %304 = vmatpush2.msra.mxu0 0.0
    %305 = vmatprep.subr.mxu0 0.0
    %306 = vmatpush2.msra.mxu0 0.0
    %307 = vmatprep.mubr.f32.mxu0 0.0
    %308 = vmatmul.mubr.f32.gmra.mxu0 %v241
    %v309 = vpop.f32.mrf.mxu0
    %v310 = vadd.f32 %v238, %v309
    %v311 = vpop.f32.mrf.mxu0
    %312 = vdwg.mxu0
    %vm313 = vcmask 23552
    %314 = vst.msk [vmem:[%s7] sm:$0xff] %vm313, %v310
    // Predicated region
    $region42: #{tpu_custom_call.1} parent=1 // pred_check
      _
    $region43: #{tpu_custom_call.1} parent=1 // pred_check_branch
      %316 = sbr.rel (0) target = $region45
    $region44: #{tpu_custom_call.1} parent=1 // pred_region
      _
    $region45: #{tpu_custom_call.1} parent=1 // pred_fallthru
      _
    // Predicated region
    $region46: #{tpu_custom_call.1} parent=1 // pred_check
      _
    $region47: #{tpu_custom_call.1} parent=1 // pred_check_branch
      %318 = sbr.rel (0) target = $region49
    $region48: #{tpu_custom_call.1} parent=1 // pred_region
      _
    $region49: #{tpu_custom_call.1} parent=1 // pred_fallthru
      _
    %319 = vsyncpa [#allocation3], 1
    %320 = vsyncpa [#allocation5], 1

</llo_original>
